<compile_context>
chip_gen: v6e
topology: v6e:2x2x1
jax: 0.10.0
libtpu: 0.0.40
codegen_flags: <defaults>
</compile_context>

<pallas_src>
import functools

import jax
import jax.numpy as jnp
from jax.experimental import pallas as pl
from jax.experimental.pallas import tpu as pltpu


def _round_up(x, m):
    return (x + m - 1) // m * m


def _conv_stats_kernel(x_ref, w_ref, b_ref, y_ref, stats_ref, *, H, W, K, pad, nb):
    """Conv (stride 1, padding=K//2) + bias for `nb` images, plus BN partial sums.

    x_ref:     [nb, Cin_p, L]      zero-padded flattened spatial, L = (H+2p)*W + 2p
    w_ref:     [Cout, K*K*Cin_p]   folded (tap-major) weights
    b_ref:     [Cout, 1]
    y_ref:     [nb, Cout, H*W]     lane-dense conv output
    stats_ref: [Cout, 2]           per-block sum / sumsq of y
    """
    HW = H * W
    Cout = w_ref.shape[0]

    # w-coordinate of every output position; horizontal taps that would wrap across
    # image rows in the flattened layout get zeroed.  Masks hoisted out of the tap loop.
    col = jax.lax.broadcasted_iota(jnp.int32, (1, HW), 1) % W
    masks = {}
    for dx in range(-pad, pad + 1):
        if dx < 0:
            masks[dx] = col >= -dx
        elif dx > 0:
            masks[dx] = col < W - dx
        else:
            masks[dx] = None

    w2d = w_ref[...]        # resident folded weights
    bvec = b_ref[...]       # [Cout, 1]

    def one_image(i, carry):
        s1, s2 = carry
        x_img = x_ref[i]                                    # [Cin_p, L], loaded once
        taps = []
        for ky in range(K):                                 # K*K static taps
            for kx in range(K):
                start = ky * W + kx
                tap = x_img[:, start:start + HW]            # [Cin_p, HW]
                m = masks[kx - pad]
                if m is not None:
                    tap = jnp.where(m, tap, 0.0)
                taps.append(tap)
        patch = jnp.concatenate(taps, axis=0)               # [K*K*Cin_p, HW] im2col
        # single MXU matmul per image, contraction depth K*K*Cin_p
        y = jnp.dot(w2d, patch, preferred_element_type=jnp.float32) + bvec
        y_ref[i] = y
        # one-traversal BN partials while y is resident in VMEM
        s1 = s1 + jnp.sum(y, axis=1, keepdims=True)          # [Cout, 1]
        s2 = s2 + jnp.sum(y * y, axis=1, keepdims=True)
        return s1, s2

    zeros = jnp.zeros((Cout, 1), jnp.float32)
    s1, s2 = jax.lax.fori_loop(0, nb, one_image, (zeros, zeros))
    stats_ref[:, 0:1] = s1
    stats_ref[:, 1:2] = s2


def _bn_lrelu_kernel(y_ref, scale_ref, shift_ref, o_ref):
    """y*scale + shift (folded BN affine) then LeakyReLU(0.2) as mul+max."""
    z = y_ref[...] * scale_ref[...] + shift_ref[...]
    o_ref[...] = jnp.maximum(z, 0.2 * z)


def critic_block_forward(x_nchw, weight, bias, gamma, beta,
                         kernel_size=3, stride=1, padding=1, eps=1e-5,
                         vmem_limit_bytes=48 * 1024 * 1024):
    """x_nchw: [N, Cin, H, W] f32.  weight: [Cout, Cin, K, K] (PyTorch layout)."""
    N, Cin, H, W = x_nchw.shape
    Cout = weight.shape[0]
    K = kernel_size
    assert stride == 1 and K % 2 == 1 and padding == K // 2, \
        "this kernel implements the module's default stride=1, padding=K//2 path"
    pad = padding
    HW = H * W
    Cin_p = _round_up(Cin, 8)          # sublane-align im2col pieces (zero channels)
    KKC = K * K * Cin_p
    L = (H + 2 * pad) * W + 2 * pad

    # ---- glue (~1x data): channel-pad, row-pad, flatten spatial per image ----
    xf = jnp.pad(x_nchw.astype(jnp.float32),
                 ((0, 0), (0, Cin_p - Cin), (pad, pad), (0, 0)))       # [N,Cin_p,H+2p,W]
    xf = jnp.pad(xf.reshape(N, Cin_p, (H + 2 * pad) * W),
                 ((0, 0), (0, 0), (pad, pad)))                          # [N,Cin_p,L]

    # weight [Cout,Cin,K,K] -> folded [Cout, K*K*Cin_p] (tap-major, matches im2col order)
    w_p = jnp.pad(weight.astype(jnp.float32),
                  ((0, 0), (0, Cin_p - Cin), (0, 0), (0, 0)))
    w2d = jnp.transpose(w_p, (0, 2, 3, 1)).reshape(Cout, KKC)
    b2 = bias.astype(jnp.float32).reshape(Cout, 1)

    # images per grid step: largest divisor of N that fits a conservative VMEM budget
    per_img = 4 * (2 * Cin_p * L + 2 * Cout * HW)           # double-buffered in/out blocks
    resident = 4 * (2 * Cout * KKC + 2 * Cout + 2 * KKC * HW + 2 * Cout * HW)
    budget = vmem_limit_bytes // 2 - resident
    nb = max(1, min(N, budget // max(per_img, 1)))
    while N % nb:
        nb -= 1
    nblk = N // nb

    cparams = pltpu.CompilerParams(
        dimension_semantics=("parallel",),     # image-block grid shards across megacore TCs
        vmem_limit_bytes=vmem_limit_bytes)     # < 64 MiB: headroom on v7x, raised cap on v5e/v6e

    # ---- pass 1: conv + bias + per-block BN partial sums ---------------------
    conv_kernel = functools.partial(_conv_stats_kernel, H=H, W=W, K=K, pad=pad, nb=nb)
    y, stats = pl.pallas_call(
        conv_kernel,
        grid=(nblk,),
        in_specs=[
            pl.BlockSpec((nb, Cin_p, L), lambda n: (n, 0, 0)),      # x block
            pl.BlockSpec((Cout, KKC), lambda n: (0, 0)),            # resident weights
            pl.BlockSpec((Cout, 1), lambda n: (0, 0)),              # resident bias
        ],
        out_specs=[
            pl.BlockSpec((nb, Cout, HW), lambda n: (n, 0, 0)),      # y, lane-dense
            pl.BlockSpec((None, Cout, 2), lambda n: (n, 0, 0)),     # per-block partials
        ],
        out_shape=[
            jax.ShapeDtypeStruct((N, Cout, HW), jnp.float32),
            jax.ShapeDtypeStruct((nblk, Cout, 2), jnp.float32),
        ],
        compiler_params=cparams,
    )(xf, w2d, b2)

    # ---- tiny XLA combine: full-batch BN stats, folded affine ----------------
    # TODO(synk): nn.BatchNorm2d running_mean/running_var (momentum) buffer updates are
    # not emulated (training-mode batch statistics only, matching the forward math).
    m_tot = N * HW
    sum_y = jnp.sum(stats[:, :, 0], axis=0)
    sum_y2 = jnp.sum(stats[:, :, 1], axis=0)
    mean = sum_y / m_tot
    var = jnp.maximum(sum_y2 / m_tot - mean * mean, 0.0)
    inv_std = jax.lax.rsqrt(var + eps)
    scale = (gamma.astype(jnp.float32) * inv_std)                    # [Cout]
    shift = (beta.astype(jnp.float32) - mean * scale)                # [Cout]
    scale = scale.reshape(1, Cout, 1)
    shift = shift.reshape(1, Cout, 1)

    # ---- pass 2: normalize + LeakyReLU, overwriting y in place ---------------
    out = pl.pallas_call(
        _bn_lrelu_kernel,
        grid=(nblk,),
        in_specs=[
            pl.BlockSpec((nb, Cout, HW), lambda n: (n, 0, 0)),      # y block
            pl.BlockSpec((1, Cout, 1), lambda n: (0, 0, 0)),        # resident scale
            pl.BlockSpec((1, Cout, 1), lambda n: (0, 0, 0)),        # resident shift
        ],
        out_specs=pl.BlockSpec((nb, Cout, HW), lambda n: (n, 0, 0)),
        out_shape=jax.ShapeDtypeStruct((N, Cout, HW), jnp.float32),
        input_output_aliases={0: 0},           # reuse the y buffer for the output
        compiler_params=cparams,
    )(y, scale, shift)

    # [N, Cout, H*W] -> NCHW directly (no transpose needed)
    return out.reshape(N, Cout, H, W)


def _reference(x_nchw, weight, bias, gamma, beta, eps=1e-5):
    # plain-JAX reference of the PyTorch forward (training-mode BN)
    y = jax.lax.conv_general_dilated(
        x_nchw, weight, window_strides=(1, 1), padding=((1, 1), (1, 1)),
        dimension_numbers=("NCHW", "OIHW", "NCHW"),
        precision=jax.lax.Precision.HIGHEST)
    y = y + bias[None, :, None, None]
    mean = jnp.mean(y, axis=(0, 2, 3), keepdims=True)
    var = jnp.mean((y - mean) ** 2, axis=(0, 2, 3), keepdims=True)
    y = (y - mean) / jnp.sqrt(var + eps)
    y = y * gamma[None, :, None, None] + beta[None, :, None, None]
    return jnp.where(y >= 0, y, 0.2 * y)


if __name__ == "__main__":
    key = jax.random.PRNGKey(0)
    k_x, k_w, k_b = jax.random.split(key, 3)

    N, Cin, Cout, H, W = 2, 4, 8, 16, 16
    K = 3

    x = jax.random.normal(k_x, (N, Cin, H, W), dtype=jnp.float32)
    # deterministic parameter init (synthetic; shapes follow nn.Conv2d / nn.BatchNorm2d)
    weight = jax.random.normal(k_w, (Cout, Cin, K, K), dtype=jnp.float32) * 0.1
    bias = jax.random.normal(k_b, (Cout,), dtype=jnp.float32) * 0.1
    gamma = jnp.ones((Cout,), dtype=jnp.float32)     # BatchNorm2d default init
    beta = jnp.zeros((Cout,), dtype=jnp.float32)

    fwd = jax.jit(critic_block_forward)
    out = jax.block_until_ready(fwd(x, weight, bias, gamma, beta))

    ref = _reference(x, weight, bias, gamma, beta)
    assert out.shape == (N, Cout, H, W)
    err = float(jnp.max(jnp.abs(out - ref)))
    assert err < 1e-4, f"mismatch vs reference: {err}"

    print("KERNEL_OK")
</pallas_src>

<mosaic_0001>
module attributes {stable_mosaic.version = 11 : i64} {
  func.func @_bn_lrelu_kernel(%arg0: i32, %arg1: memref<2x8x256xf32, #tpu.memory_space<vmem>>, %arg2: memref<1x8x1xf32, #tpu.memory_space<vmem>>, %arg3: memref<1x8x1xf32, #tpu.memory_space<vmem>>, %arg4: memref<2x8x256xf32, #tpu.memory_space<vmem>>) attributes {dimension_semantics = [#tpu.dimension_semantics<parallel>], iteration_bounds = array<i64: 1>, scalar_prefetch = 0 : i64, scratch_operands = 0 : i64, tpu.core_type = #tpu.core_type<tc>, window_params = [{transform_indices = @transform_0, window_bounds = array<i64: 2, 8, 256>}, {pipeline_mode = #tpu.pipeline_mode<synchronous>, transform_indices = @transform_1, window_bounds = array<i64: 1, 8, 1>}, {pipeline_mode = #tpu.pipeline_mode<synchronous>, transform_indices = @transform_2, window_bounds = array<i64: 1, 8, 1>}, {transform_indices = @transform_3, window_bounds = array<i64: 2, 8, 256>}]} {
    %c0 = arith.constant 0 : index
    %c0_0 = arith.constant 0 : index
    %c0_1 = arith.constant 0 : index
    %0 = vector.load %arg1[%c0, %c0_0, %c0_1] : memref<2x8x256xf32, #tpu.memory_space<vmem>>, vector<2x8x256xf32>
    %c0_2 = arith.constant 0 : index
    %c0_3 = arith.constant 0 : index
    %c0_4 = arith.constant 0 : index
    %1 = vector.load %arg2[%c0_2, %c0_3, %c0_4] : memref<1x8x1xf32, #tpu.memory_space<vmem>>, vector<1x8x1xf32>
    %2 = vector.broadcast %1 : vector<1x8x1xf32> to vector<2x8x256xf32>
    %3 = arith.mulf %0, %2 : vector<2x8x256xf32>
    %c0_5 = arith.constant 0 : index
    %c0_6 = arith.constant 0 : index
    %c0_7 = arith.constant 0 : index
    %4 = vector.load %arg3[%c0_5, %c0_6, %c0_7] : memref<1x8x1xf32, #tpu.memory_space<vmem>>, vector<1x8x1xf32>
    %5 = vector.broadcast %4 : vector<1x8x1xf32> to vector<2x8x256xf32>
    %6 = arith.addf %3, %5 : vector<2x8x256xf32>
    %cst = arith.constant 2.000000e-01 : f32
    %7 = vector.broadcast %cst : f32 to vector<2x8x256xf32>
    %8 = arith.mulf %7, %6 : vector<2x8x256xf32>
    %9 = arith.maximumf %6, %8 : vector<2x8x256xf32>
    %c0_8 = arith.constant 0 : index
    %c0_9 = arith.constant 0 : index
    %c0_10 = arith.constant 0 : index
    %10 = vector.load %arg4[%c0_8, %c0_9, %c0_10] : memref<2x8x256xf32, #tpu.memory_space<vmem>>, vector<2x8x256xf32>
    tpu.vector_store %arg4[%c0_8, %c0_9, %c0_10], %9 {strides = array<i32>} : memref<2x8x256xf32, #tpu.memory_space<vmem>>, vector<2x8x256xf32>,
    return
  }
  func.func @transform_0(%arg0: i32) -> (i32, i32, i32) {
    %c0_i32 = arith.constant 0 : i32
    %c0_i32_0 = arith.constant 0 : i32
    %c0_i32_1 = arith.constant 0 : i32
    return %arg0, %c0_i32, %c0_i32_0 : i32, i32, i32
  }
  func.func @transform_1(%arg0: i32) -> (i32, i32, i32) {
    %c0_i32 = arith.constant 0 : i32
    %c0_i32_0 = arith.constant 0 : i32
    %c0_i32_1 = arith.constant 0 : i32
    %c0_i32_2 = arith.constant 0 : i32
    return %c0_i32, %c0_i32_0, %c0_i32_1 : i32, i32, i32
  }
  func.func @transform_2(%arg0: i32) -> (i32, i32, i32) {
    %c0_i32 = arith.constant 0 : i32
    %c0_i32_0 = arith.constant 0 : i32
    %c0_i32_1 = arith.constant 0 : i32
    %c0_i32_2 = arith.constant 0 : i32
    return %c0_i32, %c0_i32_0, %c0_i32_1 : i32, i32, i32
  }
  func.func @transform_3(%arg0: i32) -> (i32, i32, i32) {
    %c0_i32 = arith.constant 0 : i32
    %c0_i32_0 = arith.constant 0 : i32
    %c0_i32_1 = arith.constant 0 : i32
    return %arg0, %c0_i32, %c0_i32_0 : i32, i32, i32
  }
}

module attributes {stable_mosaic.version = 11 : i64} {
  func.func @_conv_stats_kernel(%arg0: i32, %arg1: memref<2x8x290xf32, #tpu.memory_space<vmem>>, %arg2: memref<8x72xf32, #tpu.memory_space<vmem>>, %arg3: memref<8x1xf32, #tpu.memory_space<vmem>>, %arg4: memref<2x8x256xf32, #tpu.memory_space<vmem>>, %arg5: memref<1x8x2xf32, #tpu.memory_space<vmem>>) attributes {dimension_semantics = [#tpu.dimension_semantics<parallel>], iteration_bounds = array<i64: 1>, scalar_prefetch = 0 : i64, scratch_operands = 0 : i64, tpu.core_type = #tpu.core_type<tc>, window_params = [{transform_indices = @transform_0, window_bounds = array<i64: 2, 8, 290>}, {pipeline_mode = #tpu.pipeline_mode<synchronous>, transform_indices = @transform_1, window_bounds = array<i64: 8, 72>}, {pipeline_mode = #tpu.pipeline_mode<synchronous>, transform_indices = @transform_2, window_bounds = array<i64: 8, 1>}, {transform_indices = @transform_3, window_bounds = array<i64: 2, 8, 256>}, {transform_indices = @transform_4, window_bounds = array<i64: 1, 8, 2>}]} {
    %0 = tpu.iota {dimensions = array<i32: 1>} : vector<1x256xi32>
    %c16_i32 = arith.constant 16 : i32
    %c0_i32 = arith.constant 0 : i32
    %1 = arith.cmpi eq, %c16_i32, %c0_i32 : i32
    %c1_i32 = arith.constant 1 : i32
    %2 = arith.select %1, %c1_i32, %c16_i32 : i32
    %3 = vector.broadcast %2 : i32 to vector<1x256xi32>
    %4 = arith.remsi %0, %3 : vector<1x256xi32>
    %c0_i32_0 = arith.constant 0 : i32
    %5 = vector.broadcast %c0_i32_0 : i32 to vector<1x256xi32>
    %6 = arith.cmpi ne, %4, %5 : vector<1x256xi32>
    %c0_i32_1 = arith.constant 0 : i32
    %7 = vector.broadcast %c0_i32_1 : i32 to vector<1x256xi32>
    %8 = arith.cmpi slt, %4, %7 : vector<1x256xi32>
    %c0_i32_2 = arith.constant 0 : i32
    %9 = arith.cmpi slt, %2, %c0_i32_2 : i32
    %10 = vector.broadcast %9 : i1 to vector<1x256xi1>
    %11 = vector.broadcast %10 : vector<1x256xi1> to vector<1x256xi1>
    %12 = arith.xori %8, %11 : vector<1x256xi1>
    %13 = arith.andi %12, %6 : vector<1x256xi1>
    %14 = vector.broadcast %2 : i32 to vector<1x256xi32>
    %15 = arith.addi %4, %14 : vector<1x256xi32>
    %16 = arith.select %13, %15, %4 : vector<1x256xi1>, vector<1x256xi32>
    %c1_i32_3 = arith.constant 1 : i32
    %17 = vector.broadcast %c1_i32_3 : i32 to vector<1x256xi32>
    %18 = arith.cmpi sge, %16, %17 : vector<1x256xi32>
    %c15_i32 = arith.constant 15 : i32
    %19 = vector.broadcast %c15_i32 : i32 to vector<1x256xi32>
    %20 = arith.cmpi slt, %16, %19 : vector<1x256xi32>
    %c0 = arith.constant 0 : index
    %c0_4 = arith.constant 0 : index
    %21 = vector.load %arg2[%c0, %c0_4] : memref<8x72xf32, #tpu.memory_space<vmem>>, vector<8x72xf32>
    %c0_5 = arith.constant 0 : index
    %c0_6 = arith.constant 0 : index
    %22 = vector.load %arg3[%c0_5, %c0_6] : memref<8x1xf32, #tpu.memory_space<vmem>>, vector<8x1xf32>
    %cst = arith.constant 0.000000e+00 : f32
    %23 = vector.broadcast %cst : f32 to vector<8x1xf32>
    %c0_i32_7 = arith.constant 0 : i32
    %c2_i32 = arith.constant 2 : i32
    %24 = arith.addi %c0_i32_7, %c2_i32 : i32
    %c1_i32_8 = arith.constant 1 : i32
    %25:2 = scf.for %arg6 = %c0_i32_7 to %24 step %c1_i32_8 iter_args(%arg7 = %23, %arg8 = %23) -> (vector<8x1xf32>, vector<8x1xf32>)  : i32 {
      %32 = arith.index_cast %arg6 : i32 to index
      %c0_15 = arith.constant 0 : index
      %c0_16 = arith.constant 0 : index
      %33 = vector.load %arg1[%32, %c0_15, %c0_16] : memref<2x8x290xf32, #tpu.memory_space<vmem>>, vector<1x8x290xf32>
      %34 = vector.shape_cast %33 : vector<1x8x290xf32> to vector<8x290xf32>
      %35 = vector.extract_strided_slice %34 {offsets = [0, 0], sizes = [8, 256], strides = [1, 1]} : vector<8x290xf32> to vector<8x256xf32>
      %cst_17 = arith.constant 0.000000e+00 : f32
      %36 = vector.shape_cast %18 : vector<1x256xi1> to vector<1x256xi1>
      %37 = vector.broadcast %36 : vector<1x256xi1> to vector<8x256xi1>
      %38 = vector.broadcast %cst_17 : f32 to vector<8x256xf32>
      %39 = arith.select %37, %35, %38 : vector<8x256xi1>, vector<8x256xf32>
      %40 = vector.extract_strided_slice %34 {offsets = [0, 1], sizes = [8, 256], strides = [1, 1]} : vector<8x290xf32> to vector<8x256xf32>
      %41 = vector.extract_strided_slice %34 {offsets = [0, 2], sizes = [8, 256], strides = [1, 1]} : vector<8x290xf32> to vector<8x256xf32>
      %cst_18 = arith.constant 0.000000e+00 : f32
      %42 = vector.shape_cast %20 : vector<1x256xi1> to vector<1x256xi1>
      %43 = vector.broadcast %42 : vector<1x256xi1> to vector<8x256xi1>
      %44 = vector.broadcast %cst_18 : f32 to vector<8x256xf32>
      %45 = arith.select %43, %41, %44 : vector<8x256xi1>, vector<8x256xf32>
      %46 = vector.extract_strided_slice %34 {offsets = [0, 16], sizes = [8, 256], strides = [1, 1]} : vector<8x290xf32> to vector<8x256xf32>
      %cst_19 = arith.constant 0.000000e+00 : f32
      %47 = vector.shape_cast %18 : vector<1x256xi1> to vector<1x256xi1>
      %48 = vector.broadcast %47 : vector<1x256xi1> to vector<8x256xi1>
      %49 = vector.broadcast %cst_19 : f32 to vector<8x256xf32>
      %50 = arith.select %48, %46, %49 : vector<8x256xi1>, vector<8x256xf32>
      %51 = vector.extract_strided_slice %34 {offsets = [0, 17], sizes = [8, 256], strides = [1, 1]} : vector<8x290xf32> to vector<8x256xf32>
      %52 = vector.extract_strided_slice %34 {offsets = [0, 18], sizes = [8, 256], strides = [1, 1]} : vector<8x290xf32> to vector<8x256xf32>
      %cst_20 = arith.constant 0.000000e+00 : f32
      %53 = vector.shape_cast %20 : vector<1x256xi1> to vector<1x256xi1>
      %54 = vector.broadcast %53 : vector<1x256xi1> to vector<8x256xi1>
      %55 = vector.broadcast %cst_20 : f32 to vector<8x256xf32>
      %56 = arith.select %54, %52, %55 : vector<8x256xi1>, vector<8x256xf32>
      %57 = vector.extract_strided_slice %34 {offsets = [0, 32], sizes = [8, 256], strides = [1, 1]} : vector<8x290xf32> to vector<8x256xf32>
      %cst_21 = arith.constant 0.000000e+00 : f32
      %58 = vector.shape_cast %18 : vector<1x256xi1> to vector<1x256xi1>
      %59 = vector.broadcast %58 : vector<1x256xi1> to vector<8x256xi1>
      %60 = vector.broadcast %cst_21 : f32 to vector<8x256xf32>
      %61 = arith.select %59, %57, %60 : vector<8x256xi1>, vector<8x256xf32>
      %62 = vector.extract_strided_slice %34 {offsets = [0, 33], sizes = [8, 256], strides = [1, 1]} : vector<8x290xf32> to vector<8x256xf32>
      %63 = vector.extract_strided_slice %34 {offsets = [0, 34], sizes = [8, 256], strides = [1, 1]} : vector<8x290xf32> to vector<8x256xf32>
      %cst_22 = arith.constant 0.000000e+00 : f32
      %64 = vector.shape_cast %20 : vector<1x256xi1> to vector<1x256xi1>
      %65 = vector.broadcast %64 : vector<1x256xi1> to vector<8x256xi1>
      %66 = vector.broadcast %cst_22 : f32 to vector<8x256xf32>
      %67 = arith.select %65, %63, %66 : vector<8x256xi1>, vector<8x256xf32>
      %68 = tpu.concatenate %39, %40, %45, %50, %51, %56, %61, %62, %67 in 0 : vector<8x256xf32>, vector<8x256xf32>, vector<8x256xf32>, vector<8x256xf32>, vector<8x256xf32>, vector<8x256xf32>, vector<8x256xf32>, vector<8x256xf32>, vector<8x256xf32> -> vector<72x256xf32>
      %cst_23 = arith.constant dense<0.000000e+00> : vector<8x256xf32>
      %69 = tpu.matmul %21, %68, %cst_23 {dimension_numbers = #tpu.dot_dimension_numbers<[1], [0], [0], [1], [0, 0, 1, 1], [], []>} : vector<8x72xf32>, vector<72x256xf32>, vector<8x256xf32> -> vector<8x256xf32>
      %70 = vector.broadcast %22 : vector<8x1xf32> to vector<8x256xf32>
      %71 = arith.addf %69, %70 : vector<8x256xf32>
      %72 = arith.index_cast %arg6 : i32 to index
      %c0_24 = arith.constant 0 : index
      %c0_25 = arith.constant 0 : index
      %73 = vector.load %arg4[%72, %c0_24, %c0_25] : memref<2x8x256xf32, #tpu.memory_space<vmem>>, vector<1x8x256xf32>
      %74 = vector.shape_cast %73 : vector<1x8x256xf32> to vector<8x256xf32>
      %75 = vector.shape_cast %71 : vector<8x256xf32> to vector<1x8x256xf32>
      tpu.vector_store %arg4[%72, %c0_24, %c0_25], %75 {strides = array<i32>} : memref<2x8x256xf32, #tpu.memory_space<vmem>>, vector<1x8x256xf32>,
      %cst_26 = arith.constant dense<0.000000e+00> : vector<8xf32>
      %76 = vector.multi_reduction <add>, %71, %cst_26 [1] : vector<8x256xf32> to vector<8xf32>
      %77 = vector.shape_cast %76 : vector<8xf32> to vector<8x1xf32>
      %78 = arith.addf %arg7, %77 : vector<8x1xf32>
      %79 = arith.mulf %71, %71 : vector<8x256xf32>
      %cst_27 = arith.constant dense<0.000000e+00> : vector<8xf32>
      %80 = vector.multi_reduction <add>, %79, %cst_27 [1] : vector<8x256xf32> to vector<8xf32>
      %81 = vector.shape_cast %80 : vector<8xf32> to vector<8x1xf32>
      %82 = arith.addf %arg8, %81 : vector<8x1xf32>
      scf.yield %78, %82 : vector<8x1xf32>, vector<8x1xf32>
    }
    %c2_i32_9 = arith.constant 2 : i32
    %c0_10 = arith.constant 0 : index
    %c0_11 = arith.constant 0 : index
    %c0_12 = arith.constant 0 : index
    %26 = vector.load %arg5[%c0_10, %c0_11, %c0_12] : memref<1x8x2xf32, #tpu.memory_space<vmem>>, vector<1x8x1xf32>
    %27 = vector.shape_cast %26 : vector<1x8x1xf32> to vector<8x1xf32>
    %28 = vector.shape_cast %25#0 : vector<8x1xf32> to vector<1x8x1xf32>
    tpu.vector_store %arg5[%c0_10, %c0_11, %c0_12], %28 {strides = array<i32>} : memref<1x8x2xf32, #tpu.memory_space<vmem>>, vector<1x8x1xf32>,
    %c0_13 = arith.constant 0 : index
    %c0_14 = arith.constant 0 : index
    %c1 = arith.constant 1 : index
    %29 = vector.load %arg5[%c0_13, %c0_14, %c1] : memref<1x8x2xf32, #tpu.memory_space<vmem>>, vector<1x8x1xf32>
    %30 = vector.shape_cast %29 : vector<1x8x1xf32> to vector<8x1xf32>
    %31 = vector.shape_cast %25#1 : vector<8x1xf32> to vector<1x8x1xf32>
    tpu.vector_store %arg5[%c0_13, %c0_14, %c1], %31 {strides = array<i32>} : memref<1x8x2xf32, #tpu.memory_space<vmem>>, vector<1x8x1xf32>,
    return
  }
  func.func @transform_0(%arg0: i32) -> (i32, i32, i32) {
    %c0_i32 = arith.constant 0 : i32
    %c0_i32_0 = arith.constant 0 : i32
    %c0_i32_1 = arith.constant 0 : i32
    return %arg0, %c0_i32, %c0_i32_0 : i32, i32, i32
  }
  func.func @transform_1(%arg0: i32) -> (i32, i32) {
    %c0_i32 = arith.constant 0 : i32
    %c0_i32_0 = arith.constant 0 : i32
    %c0_i32_1 = arith.constant 0 : i32
    return %c0_i32, %c0_i32_0 : i32, i32
  }
  func.func @transform_2(%arg0: i32) -> (i32, i32) {
    %c0_i32 = arith.constant 0 : i32
    %c0_i32_0 = arith.constant 0 : i32
    %c0_i32_1 = arith.constant 0 : i32
    return %c0_i32, %c0_i32_0 : i32, i32
  }
  func.func @transform_3(%arg0: i32) -> (i32, i32, i32) {
    %c0_i32 = arith.constant 0 : i32
    %c0_i32_0 = arith.constant 0 : i32
    %c0_i32_1 = arith.constant 0 : i32
    return %arg0, %c0_i32, %c0_i32_0 : i32, i32, i32
  }
  func.func @transform_4(%arg0: i32) -> (i32, i32, i32) {
    %c0_i32 = arith.constant 0 : i32
    %c0_i32_0 = arith.constant 0 : i32
    %c0_i32_1 = arith.constant 0 : i32
    return %arg0, %c0_i32, %c0_i32_0 : i32, i32, i32
  }
}

</mosaic_0001>

<llo_original>
// kernel: critic_block_forward.3
$region0: #{critic_block_forward.3}
  #allocation0 [shape = 'u32[]', space=smem, size = 0x4, offset = 0x4, fixed_abs, tag = 'smem constant byte address 0x4 - core index']
  #allocation1 [shape = 'u32[144,128]{1,0:T(1,128)}', space=vmem, size = 0x12000, scoped, tag = 'internal scratch']
  %s0 = inlined_call_operand.vmem [shape: f32[2,8,256], index: 0, kind: input, shape index: {}, may-alias: {0,3}]
  %s1 = inlined_call_operand.vmem [shape: f32[1,8,1], index: 1, kind: input, shape index: {}]
  %s2 = inlined_call_operand.vmem [shape: f32[1,8,1], index: 2, kind: input, shape index: {}]
  %s3 = inlined_call_operand.vmem [shape: f32[2,8,256], index: 3, kind: output, shape index: {}, may-alias: {0,3}]
  %s4 = sld [smem:[#allocation0]]
  $region22: #{critic_block_forward.3} parent=0
    _
  %s6 = ssub.s32 1, %s4
  %s7 = scalar_select 0, %s6, %s4
  // Predicated region
  $region2: #{critic_block_forward.3} parent=0 // pred_check
    _
  $region3: #{critic_block_forward.3} parent=0 // pred_check_branch
    %9 = sbr.rel (0) target = $region5
  $region4: #{critic_block_forward.3} parent=0 // pred_region
    _
  $region5: #{critic_block_forward.3} parent=0 // pred_fallthru
    _
  // Predicated region
  $region6: #{critic_block_forward.3} parent=0 // pred_check
    _
  $region7: #{critic_block_forward.3} parent=0 // pred_check_branch
    %11 = sbr.rel (0) target = $region9
  $region8: #{critic_block_forward.3} parent=0 // pred_region
    _
  $region9: #{critic_block_forward.3} parent=0 // pred_fallthru
    _
  // Predicated region
  $region10: #{critic_block_forward.3} parent=0 // pred_check
    _
  $region11: #{critic_block_forward.3} parent=0 // pred_check_branch
    %13 = sbr.rel (0) target = $region13
  $region12: #{critic_block_forward.3} parent=0 // pred_region
    _
  $region13: #{critic_block_forward.3} parent=0 // pred_fallthru
    _
  %v14 = vld [vmem:[%s0] sm:$0xff]
  %v15 = vld [vmem:[%s0 + $0x8] sm:$0xff]
  %v16 = vld [vmem:[%s0 + $0x10] sm:$0xff]
  %v17 = vld [vmem:[%s0 + $0x18] sm:$0xff]
  %v18 = vld [vmem:[%s1] sm:$0xff]
  %20 = vset.pattern.permute.xlu0 0
  %21 = vperm.xlu0 %20, %v18
  %v22 = vpop.permute.xlu0 %21
  %v24 = vmul.f32 %v14, %v22
  %v25 = vmul.f32 %v15, %v22
  %v26 = vmul.f32 %v16, %v22
  %v27 = vmul.f32 %v17, %v22
  %v28 = vld [vmem:[%s2] sm:$0xff]
  %30 = vset.pattern.permute.xlu0 0
  %31 = vperm.xlu0 %30, %v28
  %v32 = vpop.permute.xlu0 %31
  %v34 = vadd.f32 %v24, %v32
  %v35 = vadd.f32 %v25, %v32
  %v36 = vadd.f32 %v26, %v32
  %v37 = vadd.f32 %v27, %v32
  %v38 = vmul.f32 %v34, 0.2
  %v39 = vmul.f32 %v35, 0.2
  %v40 = vmul.f32 %v36, 0.2
  %v41 = vmul.f32 %v37, 0.2
  %v42 = vmax.f32 %v34, %v38
  %v43 = vmax.f32 %v35, %v39
  %v44 = vmax.f32 %v36, %v40
  %v45 = vmax.f32 %v37, %v41
  %46 = vst [vmem:[%s3] sm:$0xff] %v42
  %47 = vst [vmem:[%s3 + $0x8] sm:$0xff] %v43
  %48 = vst [vmem:[%s3 + $0x10] sm:$0xff] %v44
  %49 = vst [vmem:[%s3 + $0x18] sm:$0xff] %v45
  // Predicated region
  $region14: #{critic_block_forward.3} parent=0 // pred_check
    _
  $region15: #{critic_block_forward.3} parent=0 // pred_check_branch
    %51 = sbr.rel (0) target = $region17
  $region16: #{critic_block_forward.3} parent=0 // pred_region
    _
  $region17: #{critic_block_forward.3} parent=0 // pred_fallthru
    _
  // Predicated region
  $region18: #{critic_block_forward.3} parent=0 // pred_check
    _
  $region19: #{critic_block_forward.3} parent=0 // pred_check_branch
    %53 = sbr.rel (0) target = $region21
  $region20: #{critic_block_forward.3} parent=0 // pred_region
    _
  $region21: #{critic_block_forward.3} parent=0 // pred_fallthru
    _

// kernel: critic_block_forward.2
$region0: #{critic_block_forward.2}
  #allocation0 [shape = 'u32[]', space=smem, size = 0x4, offset = 0x4, fixed_abs, tag = 'smem constant byte address 0x4 - core index']
  #allocation1 [shape = 'u32[144,128]{1,0:T(1,128)}', space=vmem, size = 0x12000, scoped, tag = 'internal scratch']
  %s0 = inlined_call_operand.vmem [shape: f32[2,8,290], index: 0, kind: input, shape index: {}]
  %s1 = inlined_call_operand.vmem [shape: f32[8,72], index: 1, kind: input, shape index: {}]
  %s2 = inlined_call_operand.vmem [shape: f32[8,1], index: 2, kind: input, shape index: {}]
  %s3 = inlined_call_operand.vmem [shape: f32[2,8,256], index: 3, kind: output, shape index: {0}]
  %s4 = inlined_call_operand.vmem [shape: f32[1,8,2], index: 4, kind: output, shape index: {1}]
  %5 = xla_tuple %s3, %s4
  %s6 = sld [smem:[#allocation0]]
  $region37: #{critic_block_forward.2} parent=0
    _
  %s8 = ssub.s32 1, %s6
  %s9 = scalar_select 0, %s8, %s6
  // Predicated region
  $region2: #{critic_block_forward.2} parent=0 // pred_check
    _
  $region3: #{critic_block_forward.2} parent=0 // pred_check_branch
    %11 = sbr.rel (0) target = $region5
  $region4: #{critic_block_forward.2} parent=0 // pred_region
    _
  $region5: #{critic_block_forward.2} parent=0 // pred_fallthru
    _
  // Predicated region
  $region6: #{critic_block_forward.2} parent=0 // pred_check
    _
  $region7: #{critic_block_forward.2} parent=0 // pred_check_branch
    %13 = sbr.rel (0) target = $region9
  $region8: #{critic_block_forward.2} parent=0 // pred_region
    _
  $region9: #{critic_block_forward.2} parent=0 // pred_fallthru
    _
  // Predicated region
  $region10: #{critic_block_forward.2} parent=0 // pred_check
    _
  $region11: #{critic_block_forward.2} parent=0 // pred_check_branch
    %15 = sbr.rel (0) target = $region13
  $region12: #{critic_block_forward.2} parent=0 // pred_region
    _
  $region13: #{critic_block_forward.2} parent=0 // pred_fallthru
    _
  %v16 = vlaneseq
  %v17 = vand.u32 %v16, 127
  %v18 = vadd.s32 %v17, 128
  %vm19 = vcmp.lt.s32.totalorder %v17, 0
  %v20 = vsub.s32 0, %v17
  %v21 = vsel %vm19, %v20, %v17
  %v22 = vshrl.u32 %v21, 4
  %v23 = vand.u32 %v21, 15
  %v24 = vsub.s32 0, %v23
  %v25 = vsel %vm19, %v24, %v23
  %vm26 = vcmp.lt.s32.totalorder %v18, 0
  %v27 = vsub.s32 0, %v18
  %v28 = vsel %vm26, %v27, %v18
  %v29 = vshrl.u32 %v28, 4
  %v30 = vand.u32 %v28, 15
  %v31 = vsub.s32 0, %v30
  %v32 = vsel %vm26, %v31, %v30
  %vm33 = vcmp.ne.s32.totalorder %v25, 0
  %vm34 = vcmp.ne.s32.totalorder %v32, 0
  %vm35 = vcmp.lt.s32.totalorder %v25, 0
  %vm36 = vcmp.lt.s32.totalorder %v32, 0
  %vm37 = vmand %vm35, %vm33
  %vm38 = vmand %vm36, %vm34
  %v39 = vadd.s32 %v25, 16
  %v40 = vadd.s32 %v32, 16
  %v41 = vsel %vm37, %v39, %v25
  %v42 = vsel %vm38, %v40, %v32
  %vm43 = vcmp.ge.s32.totalorder %v41, 1
  %vm44 = vcmp.ge.s32.totalorder %v42, 1
  %vm45 = vcmp.lt.s32.totalorder %v41, 15
  %vm46 = vcmp.lt.s32.totalorder %v42, 15
  %v47 = vld [vmem:[%s1] sm:$0xff]
  %v48 = vld [vmem:[%s2] sm:$0xff]
  loop: start=0, step=1, limit=2
  $region14: #{critic_block_forward.2} parent=0 // loop_pre_header
    _
  $region15: #{critic_block_forward.2} parent=0 // loop_header
    %s50 = sphi 0, %s54
    %p51 = scmp.ge.s32.totalorder %s50, 2
    %v55 = vphi 0.0, %v262
    %v56 = vphi 0.0, %v268
  $region16: #{critic_block_forward.2} parent=0 // loop_header_branch
    %53 = sbr.rel (%p51) target = $region20
  $region17: #{critic_block_forward.2} parent=0 // loop_body
    %s57 = smul.u32 %s50, 3
    %s58 = smul.addr %s57, 8
    %s59 = scalar_lea.vmem %s0, %s58
    %v60 = vld [vmem:[%s59] sm:$0xff]
    %v61 = vld [vmem:[%s59 + $0x8] sm:$0xff]
    %v62 = vld [vmem:[%s59 + $0x10] sm:$0xff]
    %v63 = vsel %vm43, 1, 0
    %v64 = vsel %vm44, 1, 0
    %vm65 = vcmp.eq.s32.totalorder %v63, 1
    %vm66 = vcmp.eq.s32.totalorder %v64, 1
    %v67 = vsel %vm65, %v60, 0.0
    %v68 = vsel %vm66, %v61, 0.0
    %v69 = vsel %vm45, 1, 0
    %v70 = vsel %vm46, 1, 0
    %vm71 = vcmp.eq.s32.totalorder %v69, 1
    %vm72 = vcmp.eq.s32.totalorder %v70, 1
    %76 = vrot.lane.b32.xlu0 %v60, 126
    %v77 = vpop.permute.xlu0 %76
    %78 = vrot.lane.b32.xlu0 %v61, 126
    %v79 = vpop.permute.xlu0 %78
    %80 = vrot.lane.b32.xlu0 %v62, 126
    %v81 = vpop.permute.xlu0 %80
    %vm82 = vcmask 1031168
    %v83 = vsel %vm82, %v77, %v79
    %v84 = vsel %vm82, %v79, %v81
    %v87 = vsel %vm71, %v83, 0.0
    %v88 = vsel %vm72, %v84, 0.0
    %89 = vrot.lane.b32.xlu0 %v60, 112
    %v90 = vpop.permute.xlu0 %89
    %91 = vrot.lane.b32.xlu0 %v61, 112
    %v92 = vpop.permute.xlu0 %91
    %93 = vrot.lane.b32.xlu0 %v62, 112
    %v94 = vpop.permute.xlu0 %93
    %vm95 = vcmask 916480
    %v96 = vsel %vm95, %v90, %v92
    %v97 = vsel %vm95, %v92, %v94
    %v100 = vsel %vm65, %v96, 0.0
    %v101 = vsel %vm66, %v97, 0.0
    %102 = vrot.lane.b32.xlu0 %v60, 110
    %v103 = vpop.permute.xlu0 %102
    %104 = vrot.lane.b32.xlu0 %v61, 110
    %v105 = vpop.permute.xlu0 %104
    %106 = vrot.lane.b32.xlu0 %v62, 110
    %v107 = vpop.permute.xlu0 %106
    %vm108 = vcmask 900096
    %v109 = vsel %vm108, %v103, %v105
    %v110 = vsel %vm108, %v105, %v107
    %v113 = vsel %vm71, %v109, 0.0
    %v114 = vsel %vm72, %v110, 0.0
    %115 = vrot.lane.b32.xlu0 %v60, 96
    %v116 = vpop.permute.xlu0 %115
    %117 = vrot.lane.b32.xlu0 %v61, 96
    %v118 = vpop.permute.xlu0 %117
    %119 = vrot.lane.b32.xlu0 %v62, 96
    %v120 = vpop.permute.xlu0 %119
    %vm121 = vcmask 785408
    %v122 = vsel %vm121, %v116, %v118
    %v123 = vsel %vm121, %v118, %v120
    %v126 = vsel %vm65, %v122, 0.0
    %v127 = vsel %vm66, %v123, 0.0
    %128 = vrot.lane.b32.xlu0 %v60, 94
    %v129 = vpop.permute.xlu0 %128
    %130 = vrot.lane.b32.xlu0 %v61, 94
    %v131 = vpop.permute.xlu0 %130
    %132 = vrot.lane.b32.xlu0 %v62, 94
    %v133 = vpop.permute.xlu0 %132
    %vm134 = vcmask 769024
    %v135 = vsel %vm134, %v129, %v131
    %v136 = vsel %vm134, %v131, %v133
    %v139 = vsel %vm71, %v135, 0.0
    %v140 = vsel %vm72, %v136, 0.0
    %141 = vrot.lane.b32.xlu0 %v60, 127
    %v142 = vpop.permute.xlu0 %141
    %143 = vrot.lane.b32.xlu0 %v61, 127
    %v144 = vpop.permute.xlu0 %143
    %145 = vrot.lane.b32.xlu0 %v62, 127
    %v146 = vpop.permute.xlu0 %145
    %vm147 = vcmask 1039360
    %v148 = vsel %vm147, %v142, %v144
    %v149 = vsel %vm147, %v144, %v146
    %152 = vrot.lane.b32.xlu0 %v60, 111
    %v153 = vpop.permute.xlu0 %152
    %154 = vrot.lane.b32.xlu0 %v61, 111
    %v155 = vpop.permute.xlu0 %154
    %156 = vrot.lane.b32.xlu0 %v62, 111
    %v157 = vpop.permute.xlu0 %156
    %vm158 = vcmask 908288
    %v159 = vsel %vm158, %v153, %v155
    %v160 = vsel %vm158, %v155, %v157
    %163 = vrot.lane.b32.xlu0 %v60, 95
    %v164 = vpop.permute.xlu0 %163
    %165 = vrot.lane.b32.xlu0 %v61, 95
    %v166 = vpop.permute.xlu0 %165
    %167 = vrot.lane.b32.xlu0 %v62, 95
    %v168 = vpop.permute.xlu0 %167
    %vm169 = vcmask 777216
    %v170 = vsel %vm169, %v164, %v166
    %v171 = vsel %vm169, %v166, %v168
    %175 = vset.pattern.permute.xlu0 0
    %176 = vperm.xlu0 %175, %v48
    %v177 = vpop.permute.xlu0 %176
    %vm179 = vcmask 588800
    %v181 = vsel %vm179, %v47, 0
    %183 = vmatprep.subr.mxu0 0.0
    %184 = vmatpush1.msra.mxu0 0.0
    %185 = vmatprep.subr.mxu0 0.0
    %186 = vmatpush1.msra.mxu0 0.0
    %187 = vmatprep.subr.mxu0 0.0
    %188 = vmatpush1.msra.mxu0 0.0
    %189 = vmatprep.subr.mxu0 0.0
    %190 = vmatpush1.msra.mxu0 0.0
    %191 = vmatprep.subr.mxu0 0.0
    %192 = vmatpush1.msra.mxu0 0.0
    %193 = vmatprep.subr.mxu0 0.0
    %194 = vmatpush1.msra.mxu0 0.0
    %195 = vmatprep.subr.mxu0 0.0
    %196 = vmatpush1.msra.mxu0 0.0
    %197 = vmatprep.subr.mxu0 %v140
    %198 = vmatpush1.msra.mxu0 %v139
    %199 = vmatprep.subr.mxu0 %v171
    %200 = vmatpush1.msra.mxu0 %v170
    %201 = vmatprep.subr.mxu0 %v127
    %202 = vmatpush1.msra.mxu0 %v126
    %203 = vmatprep.subr.mxu0 %v114
    %204 = vmatpush1.msra.mxu0 %v113
    %205 = vmatprep.subr.mxu0 %v160
    %206 = vmatpush1.msra.mxu0 %v159
    %207 = vmatprep.subr.mxu0 %v101
    %208 = vmatpush1.msra.mxu0 %v100
    %209 = vmatprep.subr.mxu0 %v88
    %210 = vmatpush1.msra.mxu0 %v87
    %211 = vmatprep.subr.mxu0 %v149
    %212 = vmatpush1.msra.mxu0 %v148
    %213 = vmatprep.subr.mxu0 %v68
    %214 = vmatpush1.msra.mxu0 %v67
    %215 = vmatprep.subr.mxu0 0.0
    %216 = vmatpush2.msra.mxu0 0.0
    %217 = vmatprep.subr.mxu0 0.0
    %218 = vmatpush2.msra.mxu0 0.0
    %219 = vmatprep.subr.mxu0 0.0
    %220 = vmatpush2.msra.mxu0 0.0
    %221 = vmatprep.subr.mxu0 0.0
    %222 = vmatpush2.msra.mxu0 0.0
    %223 = vmatprep.subr.mxu0 0.0
    %224 = vmatpush2.msra.mxu0 0.0
    %225 = vmatprep.subr.mxu0 0.0
    %226 = vmatpush2.msra.mxu0 0.0
    %227 = vmatprep.subr.mxu0 0.0
    %228 = vmatpush2.msra.mxu0 0.0
    %229 = vmatprep.subr.mxu0 0.0
    %230 = vmatpush2.msra.mxu0 0.0
    %231 = vmatprep.subr.mxu0 0.0
    %232 = vmatpush2.msra.mxu0 0.0
    %233 = vmatprep.subr.mxu0 0.0
    %234 = vmatpush2.msra.mxu0 0.0
    %235 = vmatprep.subr.mxu0 0.0
    %236 = vmatpush2.msra.mxu0 0.0
    %237 = vmatprep.subr.mxu0 0.0
    %238 = vmatpush2.msra.mxu0 0.0
    %239 = vmatprep.subr.mxu0 0.0
    %240 = vmatpush2.msra.mxu0 0.0
    %241 = vmatprep.subr.mxu0 0.0
    %242 = vmatpush2.msra.mxu0 0.0
    %243 = vmatprep.subr.mxu0 0.0
    %244 = vmatpush2.msra.mxu0 0.0
    %245 = vmatprep.subr.mxu0 0.0
    %246 = vmatpush2.msra.mxu0 0.0
    %247 = vmatprep.mubr.f32.mxu0 0.0
    %248 = vmatmul.mubr.f32.gmra.mxu0 %v181
    %v249 = vpop.f32.mrf.mxu0
    %v250 = vadd.f32 %v177, %v249
    %v251 = vpop.f32.mrf.mxu0
    %v252 = vadd.f32 %v177, %v251
    %253 = vdwg.mxu0
    %s254 = smul.u32 %s50, 2
    %s255 = smul.addr %s254, 8
    %s256 = scalar_lea.vmem %s3, %s255
    %257 = vst [vmem:[%s256] sm:$0xff] %v250
    %258 = vst [vmem:[%s256 + $0x8] sm:$0xff] %v252
    %v259 = vadd.f32 %v250, %v252
    %260 = vadd.xlane.f32.xlu0 %v259
    %v261 = vpop.xlane.xlu0 %260
    %v262 = vadd.f32 %v55, %v261
    %v263 = vmul.f32 %v250, %v250
    %v264 = vmul.f32 %v252, %v252
    %v265 = vadd.f32 %v263, %v264
    %266 = vadd.xlane.f32.xlu0 %v265
    %v267 = vpop.xlane.xlu0 %266
    %v268 = vadd.f32 %v56, %v267
  $region18: #{critic_block_forward.2} parent=0 // loop_footer
    %s54 = sadd.s32 1, %s50
  $region19: #{critic_block_forward.2} parent=0 // loop_footer_branch
    %49 = sbr.rel target = $region15
  $region20: #{critic_block_forward.2} parent=0 // loop_exit
    _
  %vm269 = vcmask 7168
  %270 = vst.msk [vmem:[%s4] sm:$0xff] %vm269, %v55
  %vm271 = vcmask 15368
  %272 = vst.msk [vmem:[%s4] sm:$0xff] %vm271, %v56
  // Predicated region
  $region21: #{critic_block_forward.2} parent=0 // pred_check
    _
  $region22: #{critic_block_forward.2} parent=0 // pred_check_branch
    %274 = sbr.rel (0) target = $region24
  $region23: #{critic_block_forward.2} parent=0 // pred_region
    _
  $region24: #{critic_block_forward.2} parent=0 // pred_fallthru
    _
  // Predicated region
  $region25: #{critic_block_forward.2} parent=0 // pred_check
    _
  $region26: #{critic_block_forward.2} parent=0 // pred_check_branch
    %276 = sbr.rel (0) target = $region28
  $region27: #{critic_block_forward.2} parent=0 // pred_region
    _
  $region28: #{critic_block_forward.2} parent=0 // pred_fallthru
    _
  // Predicated region
  $region29: #{critic_block_forward.2} parent=0 // pred_check
    _
  $region30: #{critic_block_forward.2} parent=0 // pred_check_branch
    %278 = sbr.rel (0) target = $region32
  $region31: #{critic_block_forward.2} parent=0 // pred_region
    _
  $region32: #{critic_block_forward.2} parent=0 // pred_fallthru
    _
  // Predicated region
  $region33: #{critic_block_forward.2} parent=0 // pred_check
    _
  $region34: #{critic_block_forward.2} parent=0 // pred_check_branch
    %280 = sbr.rel (0) target = $region36
  $region35: #{critic_block_forward.2} parent=0 // pred_region
    _
  $region36: #{critic_block_forward.2} parent=0 // pred_fallthru
    _

</llo_original>
